<compile_context>
chip_gen: v5e
topology: v5e:2x2
jax: 0.10.0
libtpu: 0.0.40
codegen_flags: <defaults>
</compile_context>

<pallas_src>
import jax
import jax.numpy as jnp
from jax.experimental import pallas as pl
from jax.experimental.pallas import tpu as pltpu


def _round_up(n, m):
    return ((n + m - 1) // m) * m


def _cdiv(a, b):
    return (a + b - 1) // b


def _pad_to(x, shape):
    return jnp.pad(x, [(0, t - s) for s, t in zip(x.shape, shape)])


def _make_flow_kernel(n_layers, leaky, dp, matmul_dtype):
    """Kernel over one (tile_b, Dp) batch tile; fused s|t params closed over."""

    def act(h):
        # LeakyReLU.  max(h, a*h) is valid (and cheaper) for 0 <= a < 1.
        if 0.0 <= leaky < 1.0:
            return jnp.maximum(h, jnp.float32(leaky) * h)
        return jnp.where(h >= 0, h, jnp.float32(leaky) * h)

    def kernel(*refs):
        mask_ref, z_ref = refs[0], refs[1]
        params = refs[2:2 + 2 * n_layers]
        z_out_ref = refs[2 + 2 * n_layers]
        logdet_ref = refs[3 + 2 * n_layers]

        b = mask_ref[...]                  # (1, Dp)  0/1 floats (0 in padding)
        z = z_ref[...]                     # (tb, Dp) f32
        zm = b * z

        # Fused s|t MLP: one matmul chain produces [scale | trans].
        h = zm.astype(matmul_dtype)
        for k in range(n_layers):
            w = params[2 * k][...]                       # (Win, Wout)
            bias = params[2 * k + 1][...]                # (1, Wout) f32
            h = jnp.dot(h, w, preferred_element_type=jnp.float32) + bias
            if k < n_layers - 1:
                h = act(h).astype(matmul_dtype)
        scale = h[:, :dp]                  # lane-aligned static slices (Dp%128==0)
        trans = h[:, dp:]

        # torch.where(isfinite(x), x, nan); abs(x) < inf is the isfinite test
        # (False for +-inf and NaN; NaN stays NaN either way).
        inf = jnp.float32(jnp.inf)
        nan = jnp.float32(jnp.nan)
        scale = jnp.where(jnp.abs(scale) < inf, scale, nan)
        trans = jnp.where(jnp.abs(trans) < inf, trans, nan)

        one_m_b = 1.0 - b
        z_out_ref[...] = (zm + one_m_b * (z * jnp.exp(scale) + trans)
                          ).astype(z_out_ref.dtype)
        logdet_ref[...] = jnp.sum(one_m_b * scale, axis=-1, keepdims=True
                                  ).astype(logdet_ref.dtype)

    return kernel


def _fuse_params(s_weights, s_biases, t_weights, t_biases, dp, matmul_dtype):
    """Pack the s and t MLPs into one matmul chain.

    Layer 0 shares the (padded) input rows between the two nets; middle layers
    are block-diagonal; the last layer writes s's output into lanes [0:Dp) and
    t's into lanes [Dp:2Dp).  All padding is ZEROS — padded lanes stay
    mathematically inert (leaky(0)=0, exp(0)=1, mask padding is also 0).
    Do not change the padding value.
    """
    n_layers = len(s_weights)
    fused_w, fused_b, widths = [], [], []
    for k in range(n_layers):
        sw = jnp.asarray(s_weights[k], jnp.float32)
        tw = jnp.asarray(t_weights[k], jnp.float32)
        sb = jnp.asarray(s_biases[k], jnp.float32).reshape(-1)
        tb_ = jnp.asarray(t_biases[k], jnp.float32).reshape(-1)
        first, last = (k == 0), (k == n_layers - 1)

        in_w = dp if first else _round_up(
            s_weights[k - 1].shape[1] + t_weights[k - 1].shape[1], 128)
        out_w = 2 * dp if last else _round_up(sw.shape[1] + tw.shape[1], 128)
        row_off = 0 if first else s_weights[k - 1].shape[1]
        col_off = dp if last else sw.shape[1]

        w = jnp.zeros((in_w, out_w), jnp.float32)
        w = w.at[:sw.shape[0], :sw.shape[1]].set(sw)
        w = w.at[row_off:row_off + tw.shape[0],
                 col_off:col_off + tw.shape[1]].set(tw)
        bias = jnp.zeros((1, out_w), jnp.float32)
        bias = bias.at[0, :sb.shape[0]].set(sb)
        bias = bias.at[0, col_off:col_off + tb_.shape[0]].set(tb_)

        fused_w.append(w.astype(matmul_dtype))
        fused_b.append(bias)
        widths.append(out_w)
    return fused_w, fused_b, widths


def masked_affine_flow_forward(z, mask, s_weights, s_biases, t_weights, t_biases,
                               *, leaky=0.01, tile_b=1024,
                               matmul_dtype=jnp.float32,
                               vmem_budget_bytes=48 * 1024 * 1024):
    """MaskedAffineFlow.forward.

    z            : (batch, dim) float32
    mask         : (dim,) or (1, dim) 0/1 float mask `b`
    *_weights    : list of (d_in, d_out) arrays (PyTorch nn.Linear weight.T)
    *_biases     : list of (d_out,) or (1, d_out) arrays
    matmul_dtype : jnp.float32 (parity with the torch module) or jnp.bfloat16
                   (native MXU dtype, ~3x faster matmuls on v6e/v7x, looser
                   numerics — relax tolerances if you enable it).
    Returns (z_out (batch, dim), log_det (batch,)).
    """
    batch, dim = z.shape
    n_layers = len(s_weights)
    assert len(t_weights) == n_layers == len(s_biases) == len(t_biases)
    assert s_weights[0].shape[0] == dim and t_weights[0].shape[0] == dim
    assert s_weights[-1].shape[1] == dim and t_weights[-1].shape[1] == dim

    dp = _round_up(dim, 128)                       # lane-dense feature dim

    fused_w, fused_b, widths = _fuse_params(
        s_weights, s_biases, t_weights, t_biases, dp, matmul_dtype)
    param_bytes = (sum(int(w.size) * w.dtype.itemsize for w in fused_w)
                   + sum(int(b_.size) * 4 for b_ in fused_b))
    max_width = max([dp] + widths)

    # --- batch tiling -------------------------------------------------------
    # Balanced tiles (padding < one tile) and grid >= 2 whenever the batch
    # allows it, so v7x's second TensorCore gets work under
    # dimension_semantics=("parallel",).
    n_tiles = _cdiv(batch, max(tile_b, 8))
    if batch >= 16:
        n_tiles = max(n_tiles, 2)
    tb = _round_up(_cdiv(batch, n_tiles), 8)

    # VMEM footprint (bytes) at a given batch tile: double-buffered activation
    # tiles + resident (double-buffered) params/mask + live intermediates.
    def vmem_est(t):
        io = 2 * 4 * t * (dp + dp + 1)             # z in + z_out + logdet
        par = 2 * (param_bytes + 4 * dp)           # fused weights/biases + mask
        live = 4 * t * (max_width + 2 * dp)        # widest act + [scale|trans]
        return io + par + live

    # Cap the tile so the footprint stays inside a v7x-safe VMEM budget.
    while tb > 8 and vmem_est(tb) > vmem_budget_bytes:
        tb = max(8, _round_up(tb // 2, 8))

    grid = _cdiv(batch, tb)
    bp = grid * tb

    # --- operands (pad only when needed: pad/slice are HBM round-trips) -----
    z_f32 = z.astype(jnp.float32)
    no_pad = (bp == batch and dp == dim)
    z_p = z_f32 if no_pad else _pad_to(z_f32, (bp, dp))
    # Mask MUST be zero-padded; padded lanes rely on mask==0 and scale==0.
    mask_p = _pad_to(jnp.asarray(mask, jnp.float32).reshape(1, -1), (1, dp))

    params = [a for wb in zip(fused_w, fused_b) for a in wb]
    args = [mask_p, z_p] + params

    const = lambda i: (0, 0)          # weights / biases / mask: VMEM-resident
    tiled = lambda i: (i, 0)          # activations: batch-tiled, pipelined

    # TODO(synk): pipeline_mode=pl.Buffered(1) on the constant-index param
    # specs would halve resident-parameter VMEM for very wide networks.
    in_specs = [pl.BlockSpec((1, dp), const),        # mask
                pl.BlockSpec((tb, dp), tiled)]       # z
    for w, b_ in zip(fused_w, fused_b):
        in_specs.append(pl.BlockSpec(w.shape, const))
        in_specs.append(pl.BlockSpec(b_.shape, const))

    out_specs = (pl.BlockSpec((tb, dp), tiled),
                 pl.BlockSpec((tb, 1), tiled))
    out_shape = (jax.ShapeDtypeStruct((bp, dp), jnp.float32),
                 jax.ShapeDtypeStruct((bp, 1), jnp.float32))

    # Advisory cost estimate for the XLA scheduler.
    mm_flops = 2 * bp * sum(w.shape[0] * w.shape[1] for w in fused_w)
    ew_flops = 10 * bp * dp
    bytes_accessed = 4 * (z_p.size + mask_p.size + bp * dp + bp) + param_bytes
    vmem_limit = int(min(max(vmem_est(tb) + (8 << 20), 32 << 20), 64 << 20))

    kernel = _make_flow_kernel(n_layers, leaky, dp, matmul_dtype)
    z_out_p, logdet_p = pl.pallas_call(
        kernel,
        out_shape=out_shape,
        grid=(grid,),
        in_specs=in_specs,
        out_specs=out_specs,
        compiler_params=pltpu.CompilerParams(
            dimension_semantics=("parallel",),
            vmem_limit_bytes=vmem_limit),
        cost_estimate=pl.CostEstimate(
            flops=mm_flops + ew_flops,
            transcendentals=bp * dp,
            bytes_accessed=int(bytes_accessed)),
    )(*args)

    z_out = z_out_p if no_pad else z_out_p[:batch, :dim]
    log_det = logdet_p.reshape(bp) if bp == batch else logdet_p[:batch, 0]
    return z_out, log_det


def init_mlp_params(key, layer_sizes):
    """PyTorch nn.Linear default init: U(-1/sqrt(fan_in), 1/sqrt(fan_in))."""
    weights, biases = [], []
    for k in range(len(layer_sizes) - 1):
        fan_in, fan_out = layer_sizes[k], layer_sizes[k + 1]
        key, kw, kb = jax.random.split(key, 3)
        bound = 1.0 / (fan_in ** 0.5)
        weights.append(jax.random.uniform(kw, (fan_in, fan_out), jnp.float32,
                                          -bound, bound))
        biases.append(jax.random.uniform(kb, (1, fan_out), jnp.float32,
                                         -bound, bound))
    return key, weights, biases


def masked_affine_flow_reference(z, mask, s_w, s_b, t_w, t_b, leaky=0.01):
    """Pure-JAX reference mirroring MaskedAffineFlow.forward."""
    hp = jax.lax.Precision.HIGHEST

    def mlp(h, ws, bs):
        for k, (w, b) in enumerate(zip(ws, bs)):
            h = jnp.dot(h, w, precision=hp) + b.reshape(1, -1)
            if k < len(ws) - 1:
                h = jnp.where(h >= 0, h, leaky * h)
        return h

    b = jnp.asarray(mask, jnp.float32).reshape(1, -1)
    zm = b * z
    scale = mlp(zm, s_w, s_b)
    trans = mlp(zm, t_w, t_b)
    scale = jnp.where(jnp.isfinite(scale), scale, jnp.nan)
    trans = jnp.where(jnp.isfinite(trans), trans, jnp.nan)
    z_out = zm + (1.0 - b) * (z * jnp.exp(scale) + trans)
    log_det = jnp.sum((1.0 - b) * scale, axis=1)
    return z_out, log_det


if __name__ == "__main__":
    # Mirrors the deepchem docstring example: dim=2, 96 samples, hidden=16,
    # s/t = Linear -> LeakyReLU -> Linear -> LeakyReLU -> Linear.
    dim, hidden, batch = 2, 16, 96
    leaky = 0.01  # nn.LeakyReLU() default negative_slope

    key = jax.random.PRNGKey(0)
    key, kz = jax.random.split(key)
    z = jax.random.normal(kz, (batch, dim), jnp.float32)
    mask = jnp.array([1.0, 0.0], jnp.float32)  # real-NVP alternating mask

    sizes = [dim, hidden, hidden, dim]
    key, s_w, s_b = init_mlp_params(key, sizes)
    key, t_w, t_b = init_mlp_params(key, sizes)

    z_out, log_det = masked_affine_flow_forward(
        z, mask, s_w, s_b, t_w, t_b, leaky=leaky)
    z_out, log_det = jax.block_until_ready((z_out, log_det))

    z_ref, ld_ref = masked_affine_flow_reference(
        z, mask, s_w, s_b, t_w, t_b, leaky=leaky)
    assert z_out.shape == (batch, dim)
    assert log_det.shape == (batch,)
    assert jnp.allclose(z_out, z_ref, atol=1e-4, rtol=1e-4), "z_out mismatch"
    assert jnp.allclose(log_det, ld_ref, atol=1e-4, rtol=1e-4), "log_det mismatch"

    # Second config exercising the balanced batch-padding (bp != batch) path.
    batch2 = 100
    key, kz2 = jax.random.split(key)
    z2 = jax.random.normal(kz2, (batch2, dim), jnp.float32)
    z_out2, log_det2 = masked_affine_flow_forward(
        z2, mask, s_w, s_b, t_w, t_b, leaky=leaky)
    z_out2, log_det2 = jax.block_until_ready((z_out2, log_det2))
    z_ref2, ld_ref2 = masked_affine_flow_reference(
        z2, mask, s_w, s_b, t_w, t_b, leaky=leaky)
    assert z_out2.shape == (batch2, dim)
    assert log_det2.shape == (batch2,)
    assert jnp.allclose(z_out2, z_ref2, atol=1e-4, rtol=1e-4), \
        "z_out mismatch (padded batch)"
    assert jnp.allclose(log_det2, ld_ref2, atol=1e-4, rtol=1e-4), \
        "log_det mismatch (padded batch)"

    print("KERNEL_OK")
</pallas_src>

<mosaic_0001>
module attributes {stable_mosaic.version = 11 : i64} {
  func.func @kernel(%arg0: i32, %arg1: memref<1x128xf32, #tpu.memory_space<vmem>>, %arg2: memref<48x128xf32, #tpu.memory_space<vmem>>, %arg3: memref<128x128xf32, #tpu.memory_space<vmem>>, %arg4: memref<1x128xf32, #tpu.memory_space<vmem>>, %arg5: memref<128x128xf32, #tpu.memory_space<vmem>>, %arg6: memref<1x128xf32, #tpu.memory_space<vmem>>, %arg7: memref<128x256xf32, #tpu.memory_space<vmem>>, %arg8: memref<1x256xf32, #tpu.memory_space<vmem>>, %arg9: memref<48x128xf32, #tpu.memory_space<vmem>>, %arg10: memref<48x1xf32, #tpu.memory_space<vmem>>) attributes {dimension_semantics = [#tpu.dimension_semantics<parallel>], iteration_bounds = array<i64: 2>, scalar_prefetch = 0 : i64, scratch_operands = 0 : i64, tpu.core_type = #tpu.core_type<tc>, window_params = [{pipeline_mode = #tpu.pipeline_mode<synchronous>, transform_indices = @transform_0, window_bounds = array<i64: 1, 128>}, {transform_indices = @transform_1, window_bounds = array<i64: 48, 128>}, {pipeline_mode = #tpu.pipeline_mode<synchronous>, transform_indices = @transform_2, window_bounds = array<i64: 128, 128>}, {pipeline_mode = #tpu.pipeline_mode<synchronous>, transform_indices = @transform_3, window_bounds = array<i64: 1, 128>}, {pipeline_mode = #tpu.pipeline_mode<synchronous>, transform_indices = @transform_4, window_bounds = array<i64: 128, 128>}, {pipeline_mode = #tpu.pipeline_mode<synchronous>, transform_indices = @transform_5, window_bounds = array<i64: 1, 128>}, {pipeline_mode = #tpu.pipeline_mode<synchronous>, transform_indices = @transform_6, window_bounds = array<i64: 128, 256>}, {pipeline_mode = #tpu.pipeline_mode<synchronous>, transform_indices = @transform_7, window_bounds = array<i64: 1, 256>}, {transform_indices = @transform_8, window_bounds = array<i64: 48, 128>}, {transform_indices = @transform_9, window_bounds = array<i64: 48, 1>}]} {
    %c0 = arith.constant 0 : index
    %c0_0 = arith.constant 0 : index
    %0 = vector.load %arg1[%c0, %c0_0] : memref<1x128xf32, #tpu.memory_space<vmem>>, vector<1x128xf32>
    %c0_1 = arith.constant 0 : index
    %c0_2 = arith.constant 0 : index
    %1 = vector.load %arg2[%c0_1, %c0_2] : memref<48x128xf32, #tpu.memory_space<vmem>>, vector<48x128xf32>
    %2 = vector.broadcast %0 : vector<1x128xf32> to vector<48x128xf32>
    %3 = arith.mulf %2, %1 : vector<48x128xf32>
    %c0_3 = arith.constant 0 : index
    %c0_4 = arith.constant 0 : index
    %4 = vector.load %arg3[%c0_3, %c0_4] : memref<128x128xf32, #tpu.memory_space<vmem>>, vector<128x128xf32>
    %c0_5 = arith.constant 0 : index
    %c0_6 = arith.constant 0 : index
    %5 = vector.load %arg4[%c0_5, %c0_6] : memref<1x128xf32, #tpu.memory_space<vmem>>, vector<1x128xf32>
    %cst = arith.constant dense<0.000000e+00> : vector<48x128xf32>
    %6 = tpu.matmul %3, %4, %cst {dimension_numbers = #tpu.dot_dimension_numbers<[1], [0], [0], [1], [0, 0, 1, 1], [], []>} : vector<48x128xf32>, vector<128x128xf32>, vector<48x128xf32> -> vector<48x128xf32>
    %7 = vector.broadcast %5 : vector<1x128xf32> to vector<48x128xf32>
    %8 = arith.addf %6, %7 : vector<48x128xf32>
    %cst_7 = arith.constant 0.00999999977 : f32
    %9 = vector.broadcast %cst_7 : f32 to vector<48x128xf32>
    %10 = arith.mulf %9, %8 : vector<48x128xf32>
    %11 = arith.maximumf %8, %10 : vector<48x128xf32>
    %c0_8 = arith.constant 0 : index
    %c0_9 = arith.constant 0 : index
    %12 = vector.load %arg5[%c0_8, %c0_9] : memref<128x128xf32, #tpu.memory_space<vmem>>, vector<128x128xf32>
    %c0_10 = arith.constant 0 : index
    %c0_11 = arith.constant 0 : index
    %13 = vector.load %arg6[%c0_10, %c0_11] : memref<1x128xf32, #tpu.memory_space<vmem>>, vector<1x128xf32>
    %cst_12 = arith.constant dense<0.000000e+00> : vector<48x128xf32>
    %14 = tpu.matmul %11, %12, %cst_12 {dimension_numbers = #tpu.dot_dimension_numbers<[1], [0], [0], [1], [0, 0, 1, 1], [], []>} : vector<48x128xf32>, vector<128x128xf32>, vector<48x128xf32> -> vector<48x128xf32>
    %15 = vector.broadcast %13 : vector<1x128xf32> to vector<48x128xf32>
    %16 = arith.addf %14, %15 : vector<48x128xf32>
    %cst_13 = arith.constant 0.00999999977 : f32
    %17 = vector.broadcast %cst_13 : f32 to vector<48x128xf32>
    %18 = arith.mulf %17, %16 : vector<48x128xf32>
    %19 = arith.maximumf %16, %18 : vector<48x128xf32>
    %c0_14 = arith.constant 0 : index
    %c0_15 = arith.constant 0 : index
    %20 = vector.load %arg7[%c0_14, %c0_15] : memref<128x256xf32, #tpu.memory_space<vmem>>, vector<128x256xf32>
    %c0_16 = arith.constant 0 : index
    %c0_17 = arith.constant 0 : index
    %21 = vector.load %arg8[%c0_16, %c0_17] : memref<1x256xf32, #tpu.memory_space<vmem>>, vector<1x256xf32>
    %cst_18 = arith.constant dense<0.000000e+00> : vector<48x256xf32>
    %22 = tpu.matmul %19, %20, %cst_18 {dimension_numbers = #tpu.dot_dimension_numbers<[1], [0], [0], [1], [0, 0, 1, 1], [], []>} : vector<48x128xf32>, vector<128x256xf32>, vector<48x256xf32> -> vector<48x256xf32>
    %23 = vector.broadcast %21 : vector<1x256xf32> to vector<48x256xf32>
    %24 = arith.addf %22, %23 : vector<48x256xf32>
    %25 = vector.extract_strided_slice %24 {offsets = [0, 0], sizes = [48, 128], strides = [1, 1]} : vector<48x256xf32> to vector<48x128xf32>
    %26 = vector.extract_strided_slice %24 {offsets = [0, 128], sizes = [48, 128], strides = [1, 1]} : vector<48x256xf32> to vector<48x128xf32>
    %27 = math.absf %25 : vector<48x128xf32>
    %cst_19 = arith.constant 0x7F800000 : f32
    %28 = vector.broadcast %cst_19 : f32 to vector<48x128xf32>
    %29 = arith.cmpf olt, %27, %28 : vector<48x128xf32>
    %cst_20 = arith.constant 0x7FC00000 : f32
    %30 = vector.broadcast %cst_20 : f32 to vector<48x128xf32>
    %31 = arith.select %29, %25, %30 : vector<48x128xi1>, vector<48x128xf32>
    %32 = math.absf %26 : vector<48x128xf32>
    %cst_21 = arith.constant 0x7F800000 : f32
    %33 = vector.broadcast %cst_21 : f32 to vector<48x128xf32>
    %34 = arith.cmpf olt, %32, %33 : vector<48x128xf32>
    %cst_22 = arith.constant 0x7FC00000 : f32
    %35 = vector.broadcast %cst_22 : f32 to vector<48x128xf32>
    %36 = arith.select %34, %26, %35 : vector<48x128xi1>, vector<48x128xf32>
    %cst_23 = arith.constant 1.000000e+00 : f32
    %37 = vector.broadcast %cst_23 : f32 to vector<1x128xf32>
    %38 = arith.subf %37, %0 : vector<1x128xf32>
    %39 = math.exp %31 : vector<48x128xf32>
    %40 = arith.mulf %1, %39 : vector<48x128xf32>
    %41 = arith.addf %40, %36 : vector<48x128xf32>
    %42 = vector.broadcast %38 : vector<1x128xf32> to vector<48x128xf32>
    %43 = arith.mulf %42, %41 : vector<48x128xf32>
    %44 = arith.addf %3, %43 : vector<48x128xf32>
    %c0_24 = arith.constant 0 : index
    %c0_25 = arith.constant 0 : index
    %45 = vector.load %arg9[%c0_24, %c0_25] : memref<48x128xf32, #tpu.memory_space<vmem>>, vector<48x128xf32>
    tpu.vector_store %arg9[%c0_24, %c0_25], %44 {strides = array<i32>} : memref<48x128xf32, #tpu.memory_space<vmem>>, vector<48x128xf32>,
    %46 = vector.broadcast %38 : vector<1x128xf32> to vector<48x128xf32>
    %47 = arith.mulf %46, %31 : vector<48x128xf32>
    %cst_26 = arith.constant dense<0.000000e+00> : vector<48xf32>
    %48 = vector.multi_reduction <add>, %47, %cst_26 [1] : vector<48x128xf32> to vector<48xf32>
    %49 = vector.shape_cast %48 : vector<48xf32> to vector<48x1xf32>
    %c0_27 = arith.constant 0 : index
    %c0_28 = arith.constant 0 : index
    %50 = vector.load %arg10[%c0_27, %c0_28] : memref<48x1xf32, #tpu.memory_space<vmem>>, vector<48x1xf32>
    tpu.vector_store %arg10[%c0_27, %c0_28], %49 {strides = array<i32>} : memref<48x1xf32, #tpu.memory_space<vmem>>, vector<48x1xf32>,
    return
  }
  func.func @transform_0(%arg0: i32) -> (i32, i32) {
    %c0_i32 = arith.constant 0 : i32
    %c0_i32_0 = arith.constant 0 : i32
    %c0_i32_1 = arith.constant 0 : i32
    return %c0_i32, %c0_i32_0 : i32, i32
  }
  func.func @transform_1(%arg0: i32) -> (i32, i32) {
    %c0_i32 = arith.constant 0 : i32
    %c0_i32_0 = arith.constant 0 : i32
    return %arg0, %c0_i32 : i32, i32
  }
  func.func @transform_2(%arg0: i32) -> (i32, i32) {
    %c0_i32 = arith.constant 0 : i32
    %c0_i32_0 = arith.constant 0 : i32
    %c0_i32_1 = arith.constant 0 : i32
    return %c0_i32, %c0_i32_0 : i32, i32
  }
  func.func @transform_3(%arg0: i32) -> (i32, i32) {
    %c0_i32 = arith.constant 0 : i32
    %c0_i32_0 = arith.constant 0 : i32
    %c0_i32_1 = arith.constant 0 : i32
    return %c0_i32, %c0_i32_0 : i32, i32
  }
  func.func @transform_4(%arg0: i32) -> (i32, i32) {
    %c0_i32 = arith.constant 0 : i32
    %c0_i32_0 = arith.constant 0 : i32
    %c0_i32_1 = arith.constant 0 : i32
    return %c0_i32, %c0_i32_0 : i32, i32
  }
  func.func @transform_5(%arg0: i32) -> (i32, i32) {
    %c0_i32 = arith.constant 0 : i32
    %c0_i32_0 = arith.constant 0 : i32
    %c0_i32_1 = arith.constant 0 : i32
    return %c0_i32, %c0_i32_0 : i32, i32
  }
  func.func @transform_6(%arg0: i32) -> (i32, i32) {
    %c0_i32 = arith.constant 0 : i32
    %c0_i32_0 = arith.constant 0 : i32
    %c0_i32_1 = arith.constant 0 : i32
    return %c0_i32, %c0_i32_0 : i32, i32
  }
  func.func @transform_7(%arg0: i32) -> (i32, i32) {
    %c0_i32 = arith.constant 0 : i32
    %c0_i32_0 = arith.constant 0 : i32
    %c0_i32_1 = arith.constant 0 : i32
    return %c0_i32, %c0_i32_0 : i32, i32
  }
  func.func @transform_8(%arg0: i32) -> (i32, i32) {
    %c0_i32 = arith.constant 0 : i32
    %c0_i32_0 = arith.constant 0 : i32
    return %arg0, %c0_i32 : i32, i32
  }
  func.func @transform_9(%arg0: i32) -> (i32, i32) {
    %c0_i32 = arith.constant 0 : i32
    %c0_i32_0 = arith.constant 0 : i32
    return %arg0, %c0_i32 : i32, i32
  }
}

</mosaic_0001>

<llo_original>
// kernel: tpu_custom_call.1
$region0: #{tpu_custom_call.1}
  #allocation0 [shape = 'u32[]', space=smem, size = 0x4, offset = 0x4, fixed_abs, tag = 'smem constant byte address 0x4 - core index']
  #allocation1 [shape = 'u32[72,128]{1,0:T(1,128)}', space=vmem, size = 0x9000, scoped, tag = 'internal scratch']
  %s0 = inlined_call_operand.hbm [shape: f32[1,128], index: 0, kind: input, shape index: {}]
  %s1 = inlined_call_operand.hbm [shape: f32[96,128], index: 1, kind: input, shape index: {}]
  %s2 = inlined_call_operand.hbm [shape: f32[128,128], index: 2, kind: input, shape index: {}]
  %s3 = inlined_call_operand.vmem [shape: f32[1,128], index: 3, kind: input, shape index: {}]
  %s4 = inlined_call_operand.hbm [shape: f32[128,128], index: 4, kind: input, shape index: {}]
  %s5 = inlined_call_operand.vmem [shape: f32[1,128], index: 5, kind: input, shape index: {}]
  %s6 = inlined_call_operand.hbm [shape: f32[128,256], index: 6, kind: input, shape index: {}]
  %s7 = inlined_call_operand.vmem [shape: f32[1,256], index: 7, kind: input, shape index: {}]
  %s8 = inlined_call_operand.hbm [shape: f32[96,128], index: 8, kind: output, shape index: {0}]
  %s9 = inlined_call_operand.vmem [shape: f32[96,1], index: 9, kind: output, shape index: {1}]
  %10 = xla_tuple %s8, %s9
  %s11 = sld [smem:[#allocation0]]
  $region93: #{tpu_custom_call.1} parent=0
    _
  %s13 = ssub.s32 1, %s11
  %s14 = scalar_select 0, %s13, %s11
  $region1: #{tpu_custom_call.1} parent=0
    #allocation2 [shape = 'u8[512]{0}', space=vmem, size = 0x400, scoped, tag = 'input window, operand 0, single buffered']
    #allocation3 [shape = 's32[2]{0}', space=sflag, size = 0x8, scoped, tag = 'scoped memory for tpu_custom_call.1']
    #allocation4 [shape = 's32[2]{0}', space=sflag, size = 0x8, scoped, tag = 'scoped memory for tpu_custom_call.1']
    #allocation5 [shape = 'u8[49152]{0}', space=vmem, size = 0xc000, scoped, tag = 'input window, operand 1']
    #allocation6 [shape = 's32[2]{0}', space=sflag, size = 0x8, scoped, tag = 'scoped memory for tpu_custom_call.1']
    #allocation7 [shape = 'u8[65536]{0}', space=vmem, size = 0x10000, scoped, tag = 'input window, operand 2, single buffered']
    #allocation8 [shape = 'u8[65536]{0}', space=vmem, size = 0x10000, scoped, tag = 'input window, operand 4, single buffered']
    #allocation9 [shape = 's32[1]{0}', space=sflag, size = 0x4, scoped, tag = 'scoped memory for tpu_custom_call.1']
    #allocation10 [shape = 'u8[131072]{0}', space=vmem, size = 0x20000, scoped, tag = 'input window, operand 6, single buffered']
    #allocation11 [shape = 'u8[49152]{0}', space=vmem, size = 0xc000, scoped, tag = 'output window, operand 0']
    %15 = vsyncpa [#allocation3], 0
    %16 = vsyncpa [#allocation6], 0
    %s17 = scalar_lea.sflag [#allocation6], 1
    %18 = vsyncpa %s17, 0
    %19 = vsyncpa [#allocation9], 0
    %20 = vsyncpa [#allocation4], 0
    %s21 = scalar_lea.sflag [#allocation4], 1
    %22 = vsyncpa %s21, 0
    loop: start=0, step=1, limit=4
    $region2: #{tpu_custom_call.1} parent=1 // loop_pre_header
      _
    $region3: #{tpu_custom_call.1} parent=1 // loop_header
      %s24 = sphi 0, %s28
      %p25 = scmp.ge.s32.totalorder %s24, 4
      %s32 = sphi 0, %s32
      %s34 = sphi 0, %s32
      %s35 = sphi 0, %s34
      %s49 = sphi 0, %s35
      %s55 = sphi 0, %s57
      %s58 = sphi 0, %s55
      %s59 = sphi 0, %s58
      %s75 = sphi 0, %s59
      %s79 = sphi 0, %s79
      %s81 = sphi 0, %s79
      %s82 = sphi 0, %s81
      %s96 = sphi 0, %s82
      %s100 = sphi 0, %s100
      %s102 = sphi 0, %s100
      %s103 = sphi 0, %s102
      %s117 = sphi 0, %s103
      %s121 = sphi 0, %s121
      %s123 = sphi 0, %s121
      %s124 = sphi 0, %s123
      %s138 = sphi 0, %s124
      %s142 = sphi 0, %s142
      %s144 = sphi 0, %s142
      %s145 = sphi 0, %s144
      %s159 = sphi 0, %s145
      %s163 = sphi 0, %s163
      %s165 = sphi 0, %s163
      %s166 = sphi 0, %s165
      %s180 = sphi 0, %s166
      %s184 = sphi 0, %s184
      %s186 = sphi 0, %s184
      %s187 = sphi 0, %s186
      %s201 = sphi 0, %s187
      %s207 = sphi 0, %s209
      %s210 = sphi 0, %s207
      %s211 = sphi 0, %s210
      %s227 = sphi 0, %s211
      %s233 = sphi 0, %s235
      %s236 = sphi 0, %s233
      %s237 = sphi 0, %s236
      %s253 = sphi 0, %s237
    $region4: #{tpu_custom_call.1} parent=1 // loop_header_branch
      %27 = sbr.rel (%p25) target = $region8
    $region5: #{tpu_custom_call.1} parent=1 // loop_body
      %s29 = ssub.s32 %s24, 1
      %s30 = ssub.s32 %s24, 2
      %s31 = sadd.s32 %s24, 1
      %s33 = sadd.s32 %s32, 1
      %p36 = scmp.eq.s32.totalorder %s24, 1
      %p37 = scmp.ne.s32.totalorder %s32, %s34
      %p38 = scmp.eq.s32.totalorder %s24, 0
      %p39 = por %p37, %p38
      %p40 = scmp.ne.s32.totalorder %s32, %s34
      %p41 = scmp.eq.s32.totalorder %s29, 1
      %p42 = por %p40, %p41
      %p43 = scmp.ne.s32.totalorder %s34, %s35
      %p44 = scmp.eq.s32.totalorder %s29, 0
      %p45 = por %p43, %p44
      %p46 = scmp.ne.s32.totalorder %s34, %s35
      %p47 = scmp.eq.s32.totalorder %s30, 1
      %p48 = por %p46, %p47
      %p50 = scmp.ne.s32.totalorder %s35, %s49
      %p51 = scmp.eq.s32.totalorder %s30, 0
      %p52 = por %p50, %p51
      %s53 = ssub.s32 %s24, %s31
      %p54 = scmp.eq.s32.totalorder %s53, 0
      %s56 = sadd.s32 %s55, 1
      %s57 = scalar_select %p54, %s55, %s56
      %p60 = pneg %p54
      %p61 = scmp.eq.s32.totalorder %s24, 1
      %p62 = por %p60, %p61
      %p63 = scmp.ne.s32.totalorder %s55, %s58
      %p64 = scmp.eq.s32.totalorder %s24, 0
      %p65 = por %p63, %p64
      %p66 = scmp.ne.s32.totalorder %s55, %s58
      %p67 = scmp.eq.s32.totalorder %s29, 1
      %p68 = por %p66, %p67
      %p69 = scmp.ne.s32.totalorder %s58, %s59
      %p70 = scmp.eq.s32.totalorder %s29, 0
      %p71 = por %p69, %p70
      %p72 = scmp.ne.s32.totalorder %s58, %s59
      %p73 = scmp.eq.s32.totalorder %s30, 1
      %p74 = por %p72, %p73
      %p76 = scmp.ne.s32.totalorder %s59, %s75
      %p77 = scmp.eq.s32.totalorder %s30, 0
      %p78 = por %p76, %p77
      %s80 = sadd.s32 %s79, 1
      %p83 = scmp.eq.s32.totalorder %s24, 1
      %p84 = scmp.ne.s32.totalorder %s79, %s81
      %p85 = scmp.eq.s32.totalorder %s24, 0
      %p86 = por %p84, %p85
      %p87 = scmp.ne.s32.totalorder %s79, %s81
      %p88 = scmp.eq.s32.totalorder %s29, 1
      %p89 = por %p87, %p88
      %p90 = scmp.ne.s32.totalorder %s81, %s82
      %p91 = scmp.eq.s32.totalorder %s29, 0
      %p92 = por %p90, %p91
      %p93 = scmp.ne.s32.totalorder %s81, %s82
      %p94 = scmp.eq.s32.totalorder %s30, 1
      %p95 = por %p93, %p94
      %p97 = scmp.ne.s32.totalorder %s82, %s96
      %p98 = scmp.eq.s32.totalorder %s30, 0
      %p99 = por %p97, %p98
      %s101 = sadd.s32 %s100, 1
      %p104 = scmp.eq.s32.totalorder %s24, 1
      %p105 = scmp.ne.s32.totalorder %s100, %s102
      %p106 = scmp.eq.s32.totalorder %s24, 0
      %p107 = por %p105, %p106
      %p108 = scmp.ne.s32.totalorder %s100, %s102
      %p109 = scmp.eq.s32.totalorder %s29, 1
      %p110 = por %p108, %p109
      %p111 = scmp.ne.s32.totalorder %s102, %s103
      %p112 = scmp.eq.s32.totalorder %s29, 0
      %p113 = por %p111, %p112
      %p114 = scmp.ne.s32.totalorder %s102, %s103
      %p115 = scmp.eq.s32.totalorder %s30, 1
      %p116 = por %p114, %p115
      %p118 = scmp.ne.s32.totalorder %s103, %s117
      %p119 = scmp.eq.s32.totalorder %s30, 0
      %p120 = por %p118, %p119
      %s122 = sadd.s32 %s121, 1
      %p125 = scmp.eq.s32.totalorder %s24, 1
      %p126 = scmp.ne.s32.totalorder %s121, %s123
      %p127 = scmp.eq.s32.totalorder %s24, 0
      %p128 = por %p126, %p127
      %p129 = scmp.ne.s32.totalorder %s121, %s123
      %p130 = scmp.eq.s32.totalorder %s29, 1
      %p131 = por %p129, %p130
      %p132 = scmp.ne.s32.totalorder %s123, %s124
      %p133 = scmp.eq.s32.totalorder %s29, 0
      %p134 = por %p132, %p133
      %p135 = scmp.ne.s32.totalorder %s123, %s124
      %p136 = scmp.eq.s32.totalorder %s30, 1
      %p137 = por %p135, %p136
      %p139 = scmp.ne.s32.totalorder %s124, %s138
      %p140 = scmp.eq.s32.totalorder %s30, 0
      %p141 = por %p139, %p140
      %s143 = sadd.s32 %s142, 1
      %p146 = scmp.eq.s32.totalorder %s24, 1
      %p147 = scmp.ne.s32.totalorder %s142, %s144
      %p148 = scmp.eq.s32.totalorder %s24, 0
      %p149 = por %p147, %p148
      %p150 = scmp.ne.s32.totalorder %s142, %s144
      %p151 = scmp.eq.s32.totalorder %s29, 1
      %p152 = por %p150, %p151
      %p153 = scmp.ne.s32.totalorder %s144, %s145
      %p154 = scmp.eq.s32.totalorder %s29, 0
      %p155 = por %p153, %p154
      %p156 = scmp.ne.s32.totalorder %s144, %s145
      %p157 = scmp.eq.s32.totalorder %s30, 1
      %p158 = por %p156, %p157
      %p160 = scmp.ne.s32.totalorder %s145, %s159
      %p161 = scmp.eq.s32.totalorder %s30, 0
      %p162 = por %p160, %p161
      %s164 = sadd.s32 %s163, 1
      %p167 = scmp.eq.s32.totalorder %s24, 1
      %p168 = scmp.ne.s32.totalorder %s163, %s165
      %p169 = scmp.eq.s32.totalorder %s24, 0
      %p170 = por %p168, %p169
      %p171 = scmp.ne.s32.totalorder %s163, %s165
      %p172 = scmp.eq.s32.totalorder %s29, 1
      %p173 = por %p171, %p172
      %p174 = scmp.ne.s32.totalorder %s165, %s166
      %p175 = scmp.eq.s32.totalorder %s29, 0
      %p176 = por %p174, %p175
      %p177 = scmp.ne.s32.totalorder %s165, %s166
      %p178 = scmp.eq.s32.totalorder %s30, 1
      %p179 = por %p177, %p178
      %p181 = scmp.ne.s32.totalorder %s166, %s180
      %p182 = scmp.eq.s32.totalorder %s30, 0
      %p183 = por %p181, %p182
      %s185 = sadd.s32 %s184, 1
      %p188 = scmp.eq.s32.totalorder %s24, 1
      %p189 = scmp.ne.s32.totalorder %s184, %s186
      %p190 = scmp.eq.s32.totalorder %s24, 0
      %p191 = por %p189, %p190
      %p192 = scmp.ne.s32.totalorder %s184, %s186
      %p193 = scmp.eq.s32.totalorder %s29, 1
      %p194 = por %p192, %p193
      %p195 = scmp.ne.s32.totalorder %s186, %s187
      %p196 = scmp.eq.s32.totalorder %s29, 0
      %p197 = por %p195, %p196
      %p198 = scmp.ne.s32.totalorder %s186, %s187
      %p199 = scmp.eq.s32.totalorder %s30, 1
      %p200 = por %p198, %p199
      %p202 = scmp.ne.s32.totalorder %s187, %s201
      %p203 = scmp.eq.s32.totalorder %s30, 0
      %p204 = por %p202, %p203
      %s205 = ssub.s32 %s24, %s31
      %p206 = scmp.eq.s32.totalorder %s205, 0
      %s208 = sadd.s32 %s207, 1
      %s209 = scalar_select %p206, %s207, %s208
      %p212 = pneg %p206
      %p213 = scmp.eq.s32.totalorder %s24, 1
      %p214 = por %p212, %p213
      %p215 = scmp.ne.s32.totalorder %s207, %s210
      %p216 = scmp.eq.s32.totalorder %s24, 0
      %p217 = por %p215, %p216
      %p218 = scmp.ne.s32.totalorder %s207, %s210
      %p219 = scmp.eq.s32.totalorder %s29, 1
      %p220 = por %p218, %p219
      %p221 = scmp.ne.s32.totalorder %s210, %s211
      %p222 = scmp.eq.s32.totalorder %s29, 0
      %p223 = por %p221, %p222
      %p224 = scmp.ne.s32.totalorder %s210, %s211
      %p225 = scmp.eq.s32.totalorder %s30, 1
      %p226 = por %p224, %p225
      %p228 = scmp.ne.s32.totalorder %s211, %s227
      %p229 = scmp.eq.s32.totalorder %s30, 0
      %p230 = por %p228, %p229
      %s231 = ssub.s32 %s24, %s31
      %p232 = scmp.eq.s32.totalorder %s231, 0
      %s234 = sadd.s32 %s233, 1
      %s235 = scalar_select %p232, %s233, %s234
      %p238 = pneg %p232
      %p239 = scmp.eq.s32.totalorder %s24, 1
      %p240 = por %p238, %p239
      %p241 = scmp.ne.s32.totalorder %s233, %s236
      %p242 = scmp.eq.s32.totalorder %s24, 0
      %p243 = por %p241, %p242
      %p244 = scmp.ne.s32.totalorder %s233, %s236
      %p245 = scmp.eq.s32.totalorder %s29, 1
      %p246 = por %p244, %p245
      %p247 = scmp.ne.s32.totalorder %s236, %s237
      %p248 = scmp.eq.s32.totalorder %s29, 0
      %p249 = por %p247, %p248
      %p250 = scmp.ne.s32.totalorder %s236, %s237
      %p251 = scmp.eq.s32.totalorder %s30, 1
      %p252 = por %p250, %p251
      %p254 = scmp.ne.s32.totalorder %s237, %s253
      %p255 = scmp.eq.s32.totalorder %s30, 0
      %p256 = por %p254, %p255
      %p257 = scmp.le.s32.totalorder 1, %s24
      %p258 = scmp.lt.s32.totalorder %s24, 3
      %p259 = pnand %p257, %p258
      %p260 = pneg %p259
      // Predicated region
      $region9: #{tpu_custom_call.1} parent=5 // pred_check
        _
      $region10: #{tpu_custom_call.1} parent=5 // pred_check_branch
        %262 = sbr.rel (%p259) target = $region12
      $region11: #{tpu_custom_call.1} parent=5 // pred_region
        %s263 = ssub.s32 %s24, 1
        // Predicated region
        $region13: #{tpu_custom_call.1} parent=11 // pred_check
          %p264 = pneg %p45
        $region14: #{tpu_custom_call.1} parent=11 // pred_check_branch
          %266 = sbr.rel (%p264) target = $region16
        $region15: #{tpu_custom_call.1} parent=11 // pred_region
          %268 = vsyncadd [#allocation3], 0
          %s270 = sshll.u32 %s0, 4
          %s271 = int_to_ptr.hbm [resolvable:$true] %s270
          %s272 = sshll.u32 [#allocation2], 4
          %s273 = int_to_ptr.vmem [resolvable:$true] %s272
          %275 = dma.hbm_to_vmem [thread:$0]  %s271, 16, %s273, [#allocation3]
        $region16: #{tpu_custom_call.1} parent=11 // pred_fallthru
          _
        // Predicated region
        $region17: #{tpu_custom_call.1} parent=11 // pred_check
          %p276 = pneg %p92
        $region18: #{tpu_custom_call.1} parent=11 // pred_check_branch
          %278 = sbr.rel (%p276) target = $region20
        $region19: #{tpu_custom_call.1} parent=11 // pred_region
          %280 = vsyncadd [#allocation6], 0
          %s281 = sshll.u32 %s2, 4
          %s282 = int_to_ptr.hbm [resolvable:$true] %s281
          %s283 = sshll.u32 [#allocation7], 4
          %s284 = int_to_ptr.vmem [resolvable:$true] %s283
          %289 = dma.hbm_to_vmem [thread:$0]  %s282, 2048, %s284, [#allocation6], 128, 128, 8
        $region20: #{tpu_custom_call.1} parent=11 // pred_fallthru
          _
        // Predicated region
        $region21: #{tpu_custom_call.1} parent=11 // pred_check
          %p290 = pneg %p113
        $region22: #{tpu_custom_call.1} parent=11 // pred_check_branch
          %292 = sbr.rel (%p290) target = $region24
        $region23: #{tpu_custom_call.1} parent=11 // pred_region
          _
        $region24: #{tpu_custom_call.1} parent=11 // pred_fallthru
          _
        // Predicated region
        $region25: #{tpu_custom_call.1} parent=11 // pred_check
          %p293 = pneg %p134
        $region26: #{tpu_custom_call.1} parent=11 // pred_check_branch
          %295 = sbr.rel (%p293) target = $region28
        $region27: #{tpu_custom_call.1} parent=11 // pred_region
          %297 = vsyncadd [#allocation9], 0
          %s298 = sshll.u32 %s4, 4
          %s299 = int_to_ptr.hbm [resolvable:$true] %s298
          %s300 = sshll.u32 [#allocation8], 4
          %s301 = int_to_ptr.vmem [resolvable:$true] %s300
          %306 = dma.hbm_to_vmem [thread:$0]  %s299, 2048, %s301, [#allocation9], 128, 128, 8
        $region28: #{tpu_custom_call.1} parent=11 // pred_fallthru
          _
        // Predicated region
        $region29: #{tpu_custom_call.1} parent=11 // pred_check
          %p307 = pneg %p155
        $region30: #{tpu_custom_call.1} parent=11 // pred_check_branch
          %309 = sbr.rel (%p307) target = $region32
        $region31: #{tpu_custom_call.1} parent=11 // pred_region
          _
        $region32: #{tpu_custom_call.1} parent=11 // pred_fallthru
          _
        // Predicated region
        $region33: #{tpu_custom_call.1} parent=11 // pred_check
          %p310 = pneg %p176
        $region34: #{tpu_custom_call.1} parent=11 // pred_check_branch
          %312 = sbr.rel (%p310) target = $region36
        $region35: #{tpu_custom_call.1} parent=11 // pred_region
          %314 = vsyncadd [#allocation9], 0
          %s315 = sshll.u32 %s6, 4
          %s316 = int_to_ptr.hbm [resolvable:$true] %s315
          %s317 = sshll.u32 [#allocation10], 4
          %s318 = int_to_ptr.vmem [resolvable:$true] %s317
          %323 = dma.hbm_to_vmem [thread:$0]  %s316, 4096, %s318, [#allocation9], 256, 256, 16
        $region36: #{tpu_custom_call.1} parent=11 // pred_fallthru
          _
        // Predicated region
        $region37: #{tpu_custom_call.1} parent=11 // pred_check
          %p324 = pneg %p197
        $region38: #{tpu_custom_call.1} parent=11 // pred_check_branch
          %326 = sbr.rel (%p324) target = $region40
        $region39: #{tpu_custom_call.1} parent=11 // pred_region
          _
        $region40: #{tpu_custom_call.1} parent=11 // pred_fallthru
          _
      $region12: #{tpu_custom_call.1} parent=5 // pred_fallthru
        _
      %p327 = scmp.lt.s32.totalorder %s24, 2
      // Predicated region
      $region41: #{tpu_custom_call.1} parent=5 // pred_check
        %p328 = pneg %p327
      $region42: #{tpu_custom_call.1} parent=5 // pred_check_branch
        %330 = sbr.rel (%p328) target = $region44
      $region43: #{tpu_custom_call.1} parent=5 // pred_region
        // Predicated region
        $region45: #{tpu_custom_call.1} parent=43 // pred_check
          %p331 = pneg %p65
        $region46: #{tpu_custom_call.1} parent=43 // pred_check_branch
          %333 = sbr.rel (%p331) target = $region48
        $region47: #{tpu_custom_call.1} parent=43 // pred_region
          %s334 = sand.u32 %s24, 1
          %s335 = scalar_lea.sflag [#allocation6], %s334
          %s336 = sand.u32 %s55, 1
          %s337 = smul.addr %s336, 48
          %s338 = scalar_lea.vmem [#allocation5], %s337
          %s339 = smul.u32 6, %s24
          %341 = vsyncadd %s335, 0
          %s342 = smul.addr %s339, 8
          %s343 = scalar_lea.hbm %s1, %s342
          %s344 = sshll.u32 %s343, 4
          %s345 = int_to_ptr.hbm [resolvable:$true] %s344
          %s346 = sshll.u32 %s338, 4
          %s347 = int_to_ptr.vmem [resolvable:$true] %s346
          %352 = dma.hbm_to_vmem [thread:$0]  %s345, 768, %s347, %s335, 128, 128, 8
        $region48: #{tpu_custom_call.1} parent=43 // pred_fallthru
          _
      $region44: #{tpu_custom_call.1} parent=5 // pred_fallthru
        _
      %p353 = scmp.le.s32.totalorder 1, %s24
      %p354 = scmp.lt.s32.totalorder %s24, 3
      %p355 = pnand %p353, %p354
      %p356 = pneg %p355
      // Predicated region
      $region49: #{tpu_custom_call.1} parent=5 // pred_check
        _
      $region50: #{tpu_custom_call.1} parent=5 // pred_check_branch
        %358 = sbr.rel (%p355) target = $region52
      $region51: #{tpu_custom_call.1} parent=5 // pred_region
        %s359 = ssub.s32 %s24, 1
        // Predicated region
        $region53: #{tpu_custom_call.1} parent=51 // pred_check
          %p360 = pneg %p45
        $region54: #{tpu_custom_call.1} parent=51 // pred_check_branch
          %362 = sbr.rel (%p360) target = $region56
        $region55: #{tpu_custom_call.1} parent=51 // pred_region
          %364 = dma.done [#allocation3], 16
        $region56: #{tpu_custom_call.1} parent=51 // pred_fallthru
          _
        %s365 = sand.u32 %s29, 1
        %s366 = scalar_lea.sflag [#allocation6], %s365
        %s367 = sand.u32 %s58, 1
        %s368 = smul.addr %s367, 48
        %s369 = scalar_lea.vmem [#allocation5], %s368
        // Predicated region
        $region57: #{tpu_custom_call.1} parent=51 // pred_check
          %p370 = pneg %p71
        $region58: #{tpu_custom_call.1} parent=51 // pred_check_branch
          %372 = sbr.rel (%p370) target = $region60
        $region59: #{tpu_custom_call.1} parent=51 // pred_region
          %374 = dma.done %s366, 768
        $region60: #{tpu_custom_call.1} parent=51 // pred_fallthru
          _
        // Predicated region
        $region61: #{tpu_custom_call.1} parent=51 // pred_check
          %p375 = pneg %p92
        $region62: #{tpu_custom_call.1} parent=51 // pred_check_branch
          %377 = sbr.rel (%p375) target = $region64
        $region63: #{tpu_custom_call.1} parent=51 // pred_region
          %379 = dma.done [#allocation6], 2048
        $region64: #{tpu_custom_call.1} parent=51 // pred_fallthru
          _
        // Predicated region
        $region65: #{tpu_custom_call.1} parent=51 // pred_check
          %p380 = pneg %p134
        $region66: #{tpu_custom_call.1} parent=51 // pred_check_branch
          %382 = sbr.rel (%p380) target = $region68
        $region67: #{tpu_custom_call.1} parent=51 // pred_region
          %384 = dma.done [#allocation9], 2048
        $region68: #{tpu_custom_call.1} parent=51 // pred_fallthru
          _
        // Predicated region
        $region69: #{tpu_custom_call.1} parent=51 // pred_check
          %p385 = pneg %p176
        $region70: #{tpu_custom_call.1} parent=51 // pred_check_branch
          %387 = sbr.rel (%p385) target = $region72
        $region71: #{tpu_custom_call.1} parent=51 // pred_region
          %389 = dma.done [#allocation9], 4096
        $region72: #{tpu_custom_call.1} parent=51 // pred_fallthru
          _
        %p390 = pneg %p45
        %p391 = pneg %p42
        %s392 = sand.u32 %s29, 1
        %s393 = scalar_lea.sflag [#allocation6], %s392
        %s394 = sand.u32 %s58, 1
        %s395 = smul.addr %s394, 48
        %s396 = scalar_lea.vmem [#allocation5], %s395
        %p397 = pneg %p71
        %p398 = pneg %p68
        %p399 = pneg %p92
        %p400 = pneg %p89
        %p401 = pneg %p113
        %p402 = pneg %p110
        %p403 = pneg %p134
        %p404 = pneg %p131
        %p405 = pneg %p155
        %p406 = pneg %p152
        %p407 = pneg %p176
        %p408 = pneg %p173
        %p409 = pneg %p197
        %p410 = pneg %p194
        %p411 = pneg %p223
        %p412 = pneg %p220
        %s413 = sand.u32 %s210, 1
        %s414 = scalar_lea.sflag [#allocation4], %s413
        %s415 = sand.u32 %s210, 1
        %s416 = smul.addr %s415, 48
        %s417 = scalar_lea.vmem [#allocation11], %s416
        %p418 = pneg %p249
        %p419 = pneg %p246
        %s420 = smul.u32 6, %s29
        %p421 = scmp.lt.s32.totalorder %s420, 11
        %s422 = scalar_select %p421, %s420, 11
        %s423 = smul.addr %s422, 8
        %s424 = scalar_lea.vmem %s9, %s423
        %s425 = smul.u32 6, %s29
        %s426 = smul.u32 6, %s29
        %s427 = smul.u32 6, %s29
        %p428 = scmp.lt.s32.totalorder %s427, 11
        %s429 = scalar_select %p428, %s427, 11
        %s430 = smul.addr %s429, 8
        %s431 = scalar_lea.vmem %s9, %s430
        %s432 = smul.u32 6, %s29
        %v433 = vld [vmem:[#allocation2] sm:$0x1]
        %v434 = vld [vmem:[%s369] sm:$0xff]
        %v435 = vld [vmem:[%s369 + $0x8] sm:$0xff]
        %v436 = vld [vmem:[%s369 + $0x10] sm:$0xff]
        %v437 = vld [vmem:[%s369 + $0x18] sm:$0xff]
        %v438 = vld [vmem:[%s369 + $0x20] sm:$0xff]
        %v439 = vld [vmem:[%s369 + $0x28] sm:$0xff]
        %v441 = vperm.slane %v433, 0
        %v443 = vmul.f32 %v441, %v434
        %v444 = vmul.f32 %v441, %v435
        %v445 = vmul.f32 %v441, %v436
        %v446 = vmul.f32 %v441, %v437
        %v447 = vmul.f32 %v441, %v438
        %v448 = vmul.f32 %v441, %v439
        %v449 = vld [vmem:[#allocation7] sm:$0xff]
        %v450 = vld [vmem:[#allocation7 + $0x8] sm:$0xff]
        %v451 = vld [vmem:[#allocation7 + $0x10] sm:$0xff]
        %v452 = vld [vmem:[#allocation7 + $0x18] sm:$0xff]
        %v453 = vld [vmem:[#allocation7 + $0x20] sm:$0xff]
        %v454 = vld [vmem:[#allocation7 + $0x28] sm:$0xff]
        %v455 = vld [vmem:[#allocation7 + $0x30] sm:$0xff]
        %v456 = vld [vmem:[#allocation7 + $0x38] sm:$0xff]
        %v457 = vld [vmem:[#allocation7 + $0x40] sm:$0xff]
        %v458 = vld [vmem:[#allocation7 + $0x48] sm:$0xff]
        %v459 = vld [vmem:[#allocation7 + $0x50] sm:$0xff]
        %v460 = vld [vmem:[#allocation7 + $0x58] sm:$0xff]
        %v461 = vld [vmem:[#allocation7 + $0x60] sm:$0xff]
        %v462 = vld [vmem:[#allocation7 + $0x68] sm:$0xff]
        %v463 = vld [vmem:[#allocation7 + $0x70] sm:$0xff]
        %v464 = vld [vmem:[#allocation7 + $0x78] sm:$0xff]
        %v465 = vld [vmem:[%s3] sm:$0x1]
        %v467 = vperm.slane %v465, 0
        %469 = vmatpush.msra.mxu0 %v464
        %470 = vmatpush.msra.mxu0 %v463
        %471 = vmatpush.msra.mxu0 %v462
        %472 = vmatpush.msra.mxu0 %v461
        %473 = vmatpush.msra.mxu0 %v460
        %474 = vmatpush.msra.mxu0 %v459
        %475 = vmatpush.msra.mxu0 %v458
        %476 = vmatpush.msra.mxu0 %v457
        %477 = vmatpush.msra.mxu0 %v456
        %478 = vmatpush.msra.mxu0 %v455
        %479 = vmatpush.msra.mxu0 %v454
        %480 = vmatpush.msra.mxu0 %v453
        %481 = vmatpush.msra.mxu0 %v452
        %482 = vmatpush.msra.mxu0 %v451
        %483 = vmatpush.msra.mxu0 %v450
        %484 = vmatpush.msra.mxu0 %v449
        %485 = vmatmul.f32.gmra.mxu0 %v443
        %v486 = vpop.f32.mrf.mxu0
        %v487 = vadd.f32 %v467, %v486
        %488 = vmatmul.f32.gmra.mxu0 %v444
        %v489 = vpop.f32.mrf.mxu0
        %v490 = vadd.f32 %v467, %v489
        %491 = vmatmul.f32.gmra.mxu0 %v445
        %v492 = vpop.f32.mrf.mxu0
        %v493 = vadd.f32 %v467, %v492
        %494 = vmatmul.f32.gmra.mxu0 %v446
        %v495 = vpop.f32.mrf.mxu0
        %v496 = vadd.f32 %v467, %v495
        %497 = vmatmul.f32.gmra.mxu0 %v447
        %v498 = vpop.f32.mrf.mxu0
        %v499 = vadd.f32 %v467, %v498
        %500 = vmatmul.f32.gmra.mxu0 %v448
        %v501 = vpop.f32.mrf.mxu0
        %v502 = vadd.f32 %v467, %v501
        %503 = vdwg.mxu0
        %v504 = vmul.f32 %v487, 0.01
        %v505 = vmul.f32 %v490, 0.01
        %v506 = vmul.f32 %v493, 0.01
        %v507 = vmul.f32 %v496, 0.01
        %v508 = vmul.f32 %v499, 0.01
        %v509 = vmul.f32 %v502, 0.01
        %v510 = vmax.f32 %v487, %v504
        %v511 = vmax.f32 %v490, %v505
        %v512 = vmax.f32 %v493, %v506
        %v513 = vmax.f32 %v496, %v507
        %v514 = vmax.f32 %v499, %v508
        %v515 = vmax.f32 %v502, %v509
        %v516 = vld [vmem:[#allocation8] sm:$0xff]
        %v517 = vld [vmem:[#allocation8 + $0x8] sm:$0xff]
        %v518 = vld [vmem:[#allocation8 + $0x10] sm:$0xff]
        %v519 = vld [vmem:[#allocation8 + $0x18] sm:$0xff]
        %v520 = vld [vmem:[#allocation8 + $0x20] sm:$0xff]
        %v521 = vld [vmem:[#allocation8 + $0x28] sm:$0xff]
        %v522 = vld [vmem:[#allocation8 + $0x30] sm:$0xff]
        %v523 = vld [vmem:[#allocation8 + $0x38] sm:$0xff]
        %v524 = vld [vmem:[#allocation8 + $0x40] sm:$0xff]
        %v525 = vld [vmem:[#allocation8 + $0x48] sm:$0xff]
        %v526 = vld [vmem:[#allocation8 + $0x50] sm:$0xff]
        %v527 = vld [vmem:[#allocation8 + $0x58] sm:$0xff]
        %v528 = vld [vmem:[#allocation8 + $0x60] sm:$0xff]
        %v529 = vld [vmem:[#allocation8 + $0x68] sm:$0xff]
        %v530 = vld [vmem:[#allocation8 + $0x70] sm:$0xff]
        %v531 = vld [vmem:[#allocation8 + $0x78] sm:$0xff]
        %v532 = vld [vmem:[%s5] sm:$0x1]
        %v534 = vperm.slane %v532, 0
        %536 = vmatpush.msra.mxu0 %v531
        %537 = vmatpush.msra.mxu0 %v530
        %538 = vmatpush.msra.mxu0 %v529
        %539 = vmatpush.msra.mxu0 %v528
        %540 = vmatpush.msra.mxu0 %v527
        %541 = vmatpush.msra.mxu0 %v526
        %542 = vmatpush.msra.mxu0 %v525
        %543 = vmatpush.msra.mxu0 %v524
        %544 = vmatpush.msra.mxu0 %v523
        %545 = vmatpush.msra.mxu0 %v522
        %546 = vmatpush.msra.mxu0 %v521
        %547 = vmatpush.msra.mxu0 %v520
        %548 = vmatpush.msra.mxu0 %v519
        %549 = vmatpush.msra.mxu0 %v518
        %550 = vmatpush.msra.mxu0 %v517
        %551 = vmatpush.msra.mxu0 %v516
        %552 = vmatmul.f32.gmra.mxu0 %v510
        %v553 = vpop.f32.mrf.mxu0
        %v554 = vadd.f32 %v534, %v553
        %555 = vmatmul.f32.gmra.mxu0 %v511
        %v556 = vpop.f32.mrf.mxu0
        %v557 = vadd.f32 %v534, %v556
        %558 = vmatmul.f32.gmra.mxu0 %v512
        %v559 = vpop.f32.mrf.mxu0
        %v560 = vadd.f32 %v534, %v559
        %561 = vmatmul.f32.gmra.mxu0 %v513
        %v562 = vpop.f32.mrf.mxu0
        %v563 = vadd.f32 %v534, %v562
        %564 = vmatmul.f32.gmra.mxu0 %v514
        %v565 = vpop.f32.mrf.mxu0
        %v566 = vadd.f32 %v534, %v565
        %567 = vmatmul.f32.gmra.mxu0 %v515
        %v568 = vpop.f32.mrf.mxu0
        %v569 = vadd.f32 %v534, %v568
        %570 = vdwg.mxu0
        %v571 = vmul.f32 %v554, 0.01
        %v572 = vmul.f32 %v557, 0.01
        %v573 = vmul.f32 %v560, 0.01
        %v574 = vmul.f32 %v563, 0.01
        %v575 = vmul.f32 %v566, 0.01
        %v576 = vmul.f32 %v569, 0.01
        %v577 = vmax.f32 %v554, %v571
        %v578 = vmax.f32 %v557, %v572
        %v579 = vmax.f32 %v560, %v573
        %v580 = vmax.f32 %v563, %v574
        %v581 = vmax.f32 %v566, %v575
        %v582 = vmax.f32 %v569, %v576
        %v583 = vld [vmem:[#allocation10] sm:$0xff]
        %v584 = vld [vmem:[#allocation10 + $0x8] sm:$0xff]
        %v585 = vld [vmem:[#allocation10 + $0x10] sm:$0xff]
        %v586 = vld [vmem:[#allocation10 + $0x18] sm:$0xff]
        %v587 = vld [vmem:[#allocation10 + $0x20] sm:$0xff]
        %v588 = vld [vmem:[#allocation10 + $0x28] sm:$0xff]
        %v589 = vld [vmem:[#allocation10 + $0x30] sm:$0xff]
        %v590 = vld [vmem:[#allocation10 + $0x38] sm:$0xff]
        %v591 = vld [vmem:[#allocation10 + $0x40] sm:$0xff]
        %v592 = vld [vmem:[#allocation10 + $0x48] sm:$0xff]
        %v593 = vld [vmem:[#allocation10 + $0x50] sm:$0xff]
        %v594 = vld [vmem:[#allocation10 + $0x58] sm:$0xff]
        %v595 = vld [vmem:[#allocation10 + $0x60] sm:$0xff]
        %v596 = vld [vmem:[#allocation10 + $0x68] sm:$0xff]
        %v597 = vld [vmem:[#allocation10 + $0x70] sm:$0xff]
        %v598 = vld [vmem:[#allocation10 + $0x78] sm:$0xff]
        %v599 = vld [vmem:[#allocation10 + $0x80] sm:$0xff]
        %v600 = vld [vmem:[#allocation10 + $0x88] sm:$0xff]
        %v601 = vld [vmem:[#allocation10 + $0x90] sm:$0xff]
        %v602 = vld [vmem:[#allocation10 + $0x98] sm:$0xff]
        %v603 = vld [vmem:[#allocation10 + $0xa0] sm:$0xff]
        %v604 = vld [vmem:[#allocation10 + $0xa8] sm:$0xff]
        %v605 = vld [vmem:[#allocation10 + $0xb0] sm:$0xff]
        %v606 = vld [vmem:[#allocation10 + $0xb8] sm:$0xff]
        %v607 = vld [vmem:[#allocation10 + $0xc0] sm:$0xff]
        %v608 = vld [vmem:[#allocation10 + $0xc8] sm:$0xff]
        %v609 = vld [vmem:[#allocation10 + $0xd0] sm:$0xff]
        %v610 = vld [vmem:[#allocation10 + $0xd8] sm:$0xff]
        %v611 = vld [vmem:[#allocation10 + $0xe0] sm:$0xff]
        %v612 = vld [vmem:[#allocation10 + $0xe8] sm:$0xff]
        %v613 = vld [vmem:[#allocation10 + $0xf0] sm:$0xff]
        %v614 = vld [vmem:[#allocation10 + $0xf8] sm:$0xff]
        %v615 = vld [vmem:[%s7] sm:$0x3]
        %v617 = vperm.slane %v615, 0
        %v618 = vperm.slane %v615, 1
        %621 = vmatpush.msra.mxu0 %v613
        %622 = vmatpush.msra.mxu0 %v611
        %623 = vmatpush.msra.mxu0 %v609
        %624 = vmatpush.msra.mxu0 %v607
        %625 = vmatpush.msra.mxu0 %v605
        %626 = vmatpush.msra.mxu0 %v603
        %627 = vmatpush.msra.mxu0 %v601
        %628 = vmatpush.msra.mxu0 %v599
        %629 = vmatpush.msra.mxu0 %v597
        %630 = vmatpush.msra.mxu0 %v595
        %631 = vmatpush.msra.mxu0 %v593
        %632 = vmatpush.msra.mxu0 %v591
        %633 = vmatpush.msra.mxu0 %v589
        %634 = vmatpush.msra.mxu0 %v587
        %635 = vmatpush.msra.mxu0 %v585
        %636 = vmatpush.msra.mxu0 %v583
        %637 = vmatmul.f32.gmra.mxu0 %v577
        %v638 = vpop.f32.mrf.mxu0
        %v639 = vadd.f32 %v617, %v638
        %640 = vmatmul.f32.gmra.mxu0 %v578
        %v641 = vpop.f32.mrf.mxu0
        %v642 = vadd.f32 %v617, %v641
        %643 = vmatmul.f32.gmra.mxu0 %v579
        %v644 = vpop.f32.mrf.mxu0
        %v645 = vadd.f32 %v617, %v644
        %646 = vmatmul.f32.gmra.mxu0 %v580
        %v647 = vpop.f32.mrf.mxu0
        %v648 = vadd.f32 %v617, %v647
        %649 = vmatmul.f32.gmra.mxu0 %v581
        %v650 = vpop.f32.mrf.mxu0
        %v651 = vadd.f32 %v617, %v650
        %652 = vmatmul.f32.gmra.mxu0 %v582
        %v653 = vpop.f32.mrf.mxu0
        %v654 = vadd.f32 %v617, %v653
        %655 = vdwg.mxu0
        %656 = vmatpush.msra.mxu0 %v614
        %657 = vmatpush.msra.mxu0 %v612
        %658 = vmatpush.msra.mxu0 %v610
        %659 = vmatpush.msra.mxu0 %v608
        %660 = vmatpush.msra.mxu0 %v606
        %661 = vmatpush.msra.mxu0 %v604
        %662 = vmatpush.msra.mxu0 %v602
        %663 = vmatpush.msra.mxu0 %v600
        %664 = vmatpush.msra.mxu0 %v598
        %665 = vmatpush.msra.mxu0 %v596
        %666 = vmatpush.msra.mxu0 %v594
        %667 = vmatpush.msra.mxu0 %v592
        %668 = vmatpush.msra.mxu0 %v590
        %669 = vmatpush.msra.mxu0 %v588
        %670 = vmatpush.msra.mxu0 %v586
        %671 = vmatpush.msra.mxu0 %v584
        %672 = vmatmul.f32.gmra.mxu0 %v577
        %v673 = vpop.f32.mrf.mxu0
        %v674 = vadd.f32 %v618, %v673
        %675 = vmatmul.f32.gmra.mxu0 %v578
        %v676 = vpop.f32.mrf.mxu0
        %v677 = vadd.f32 %v618, %v676
        %678 = vmatmul.f32.gmra.mxu0 %v579
        %v679 = vpop.f32.mrf.mxu0
        %v680 = vadd.f32 %v618, %v679
        %681 = vmatmul.f32.gmra.mxu0 %v580
        %v682 = vpop.f32.mrf.mxu0
        %v683 = vadd.f32 %v618, %v682
        %684 = vmatmul.f32.gmra.mxu0 %v581
        %v685 = vpop.f32.mrf.mxu0
        %v686 = vadd.f32 %v618, %v685
        %687 = vmatmul.f32.gmra.mxu0 %v582
        %v688 = vpop.f32.mrf.mxu0
        %v689 = vadd.f32 %v618, %v688
        %690 = vdwg.mxu0
        %v691 = vand.u32 2147483647, %v639
        %v692 = vand.u32 2147483647, %v642
        %v693 = vand.u32 2147483647, %v645
        %v694 = vand.u32 2147483647, %v648
        %v695 = vand.u32 2147483647, %v651
        %v696 = vand.u32 2147483647, %v654
        %vm697 = vcmp.lt.f32.partialorder %v691, inf
        %vm698 = vcmp.lt.f32.partialorder %v692, inf
        %vm699 = vcmp.lt.f32.partialorder %v693, inf
        %vm700 = vcmp.lt.f32.partialorder %v694, inf
        %vm701 = vcmp.lt.f32.partialorder %v695, inf
        %vm702 = vcmp.lt.f32.partialorder %v696, inf
        %v703 = vsel %vm697, %v639, nan
        %v704 = vsel %vm698, %v642, nan
        %v705 = vsel %vm699, %v645, nan
        %v706 = vsel %vm700, %v648, nan
        %v707 = vsel %vm701, %v651, nan
        %v708 = vsel %vm702, %v654, nan
        %v709 = vand.u32 2147483647, %v674
        %v710 = vand.u32 2147483647, %v677
        %v711 = vand.u32 2147483647, %v680
        %v712 = vand.u32 2147483647, %v683
        %v713 = vand.u32 2147483647, %v686
        %v714 = vand.u32 2147483647, %v689
        %vm715 = vcmp.lt.f32.partialorder %v709, inf
        %vm716 = vcmp.lt.f32.partialorder %v710, inf
        %vm717 = vcmp.lt.f32.partialorder %v711, inf
        %vm718 = vcmp.lt.f32.partialorder %v712, inf
        %vm719 = vcmp.lt.f32.partialorder %v713, inf
        %vm720 = vcmp.lt.f32.partialorder %v714, inf
        %v721 = vsel %vm715, %v674, nan
        %v722 = vsel %vm716, %v677, nan
        %v723 = vsel %vm717, %v680, nan
        %v724 = vsel %vm718, %v683, nan
        %v725 = vsel %vm719, %v686, nan
        %v726 = vsel %vm720, %v689, nan
        %v727 = vsub.f32 1.0, %v433
        %v728 = vmul.f32 %v703, 1.442695
        %v729 = vpow.pop %v728
        %v730 = vmul.f32 %v704, 1.442695
        %v731 = vpow.pop %v730
        %v732 = vmul.f32 %v705, 1.442695
        %v733 = vpow.pop %v732
        %v734 = vmul.f32 %v706, 1.442695
        %v735 = vpow.pop %v734
        %v736 = vmul.f32 %v707, 1.442695
        %v737 = vpow.pop %v736
        %v738 = vmul.f32 %v708, 1.442695
        %v739 = vpow.pop %v738
        %v740 = vmul.f32 %v434, %v729
        %v741 = vmul.f32 %v435, %v731
        %v742 = vmul.f32 %v436, %v733
        %v743 = vmul.f32 %v437, %v735
        %v744 = vmul.f32 %v438, %v737
        %v745 = vmul.f32 %v439, %v739
        %v746 = vadd.f32 %v740, %v721
        %v747 = vadd.f32 %v741, %v722
        %v748 = vadd.f32 %v742, %v723
        %v749 = vadd.f32 %v743, %v724
        %v750 = vadd.f32 %v744, %v725
        %v751 = vadd.f32 %v745, %v726
        %v753 = vperm.slane %v727, 0
        %v755 = vmul.f32 %v753, %v746
        %v756 = vmul.f32 %v753, %v747
        %v757 = vmul.f32 %v753, %v748
        %v758 = vmul.f32 %v753, %v749
        %v759 = vmul.f32 %v753, %v750
        %v760 = vmul.f32 %v753, %v751
        %v761 = vadd.f32 %v443, %v755
        %v762 = vadd.f32 %v444, %v756
        %v763 = vadd.f32 %v445, %v757
        %v764 = vadd.f32 %v446, %v758
        %v765 = vadd.f32 %v447, %v759
        %v766 = vadd.f32 %v448, %v760
        %767 = vst [vmem:[%s417] sm:$0xff] %v761
        %768 = vst [vmem:[%s417 + $0x8] sm:$0xff] %v762
        %769 = vst [vmem:[%s417 + $0x10] sm:$0xff] %v763
        %770 = vst [vmem:[%s417 + $0x18] sm:$0xff] %v764
        %771 = vst [vmem:[%s417 + $0x20] sm:$0xff] %v765
        %772 = vst [vmem:[%s417 + $0x28] sm:$0xff] %v766
        %v773 = vmul.f32 %v753, %v703
        %v774 = vmul.f32 %v753, %v704
        %v775 = vmul.f32 %v753, %v705
        %v776 = vmul.f32 %v753, %v706
        %v777 = vmul.f32 %v753, %v707
        %v778 = vmul.f32 %v753, %v708
        %779 = vadd.xlane.f32.xlu0 %v773
        %v780 = vpop.xlane.xlu0 %779
        %781 = vadd.xlane.f32.xlu0 %v774
        %v782 = vpop.xlane.xlu0 %781
        %783 = vadd.xlane.f32.xlu0 %v775
        %v784 = vpop.xlane.xlu0 %783
        %785 = vadd.xlane.f32.xlu0 %v776
        %v786 = vpop.xlane.xlu0 %785
        %787 = vadd.xlane.f32.xlu0 %v777
        %v788 = vpop.xlane.xlu0 %787
        %789 = vadd.xlane.f32.xlu0 %v778
        %v790 = vpop.xlane.xlu0 %789
        %vm791 = vcmask 7168
        %792 = vst.msk [vmem:[%s431] sm:$0xff] %vm791, %v780
        %793 = vst.msk [vmem:[%s431 + $0x8] sm:$0xff] %vm791, %v782
        %794 = vst.msk [vmem:[%s431 + $0x10] sm:$0xff] %vm791, %v784
        %795 = vst.msk [vmem:[%s431 + $0x18] sm:$0xff] %vm791, %v786
        %796 = vst.msk [vmem:[%s431 + $0x20] sm:$0xff] %vm791, %v788
        %797 = vst.msk [vmem:[%s431 + $0x28] sm:$0xff] %vm791, %v790
        %s798 = sand.u32 %s210, 1
        %s799 = scalar_lea.sflag [#allocation4], %s798
        %s800 = sand.u32 %s210, 1
        %s801 = smul.addr %s800, 48
        %s802 = scalar_lea.vmem [#allocation11], %s801
        %s803 = smul.u32 6, %s29
        %p804 = scmp.lt.s32.totalorder %s803, 11
        %s805 = scalar_select %p804, %s803, 11
        %s806 = smul.addr %s805, 8
        %s807 = scalar_lea.vmem %s9, %s806
        // Predicated region
        $region73: #{tpu_custom_call.1} parent=51 // pred_check
          %p808 = pneg %p220
        $region74: #{tpu_custom_call.1} parent=51 // pred_check_branch
          %810 = sbr.rel (%p808) target = $region76
        $region75: #{tpu_custom_call.1} parent=51 // pred_region
          %s811 = smul.u32 6, %s29
          %813 = vsyncadd %s799, 0
          %s814 = smul.addr %s811, 8
          %s815 = scalar_lea.hbm %s8, %s814
          %s816 = sshll.u32 %s802, 4
          %s817 = int_to_ptr.vmem [resolvable:$true] %s816
          %s818 = sshll.u32 %s815, 4
          %s819 = int_to_ptr.hbm [resolvable:$true] %s818
          %824 = dma.vmem_to_hbm [thread:$0]  %s817, 768, %s819, %s799, 128, 128, 8
        $region76: #{tpu_custom_call.1} parent=51 // pred_fallthru
          _
        // Predicated region
        $region77: #{tpu_custom_call.1} parent=51 // pred_check
          %p825 = pneg %p246
        $region78: #{tpu_custom_call.1} parent=51 // pred_check_branch
          %827 = sbr.rel (%p825) target = $region80
        $region79: #{tpu_custom_call.1} parent=51 // pred_region
          %s828 = smul.u32 6, %s29
        $region80: #{tpu_custom_call.1} parent=51 // pred_fallthru
          _
      $region52: #{tpu_custom_call.1} parent=5 // pred_fallthru
        _
      %p829 = scmp.le.s32.totalorder 2, %s24
      // Predicated region
      $region81: #{tpu_custom_call.1} parent=5 // pred_check
        %p830 = pneg %p829
      $region82: #{tpu_custom_call.1} parent=5 // pred_check_branch
        %832 = sbr.rel (%p830) target = $region84
      $region83: #{tpu_custom_call.1} parent=5 // pred_region
        %s833 = ssub.s32 %s24, 2
        // Predicated region
        $region85: #{tpu_custom_call.1} parent=83 // pred_check
          %p834 = pneg %p226
        $region86: #{tpu_custom_call.1} parent=83 // pred_check_branch
          %836 = sbr.rel (%p834) target = $region88
        $region87: #{tpu_custom_call.1} parent=83 // pred_region
          %s837 = sand.u32 %s211, 1
          %s838 = scalar_lea.sflag [#allocation4], %s837
          %s839 = sand.u32 %s211, 1
          %s840 = smul.addr %s839, 48
          %s841 = scalar_lea.vmem [#allocation11], %s840
          %843 = dma.done %s838, 768
        $region88: #{tpu_custom_call.1} parent=83 // pred_fallthru
          _
        // Predicated region
        $region89: #{tpu_custom_call.1} parent=83 // pred_check
          %p844 = pneg %p252
        $region90: #{tpu_custom_call.1} parent=83 // pred_check_branch
          %846 = sbr.rel (%p844) target = $region92
        $region91: #{tpu_custom_call.1} parent=83 // pred_region
          %s847 = smul.u32 6, %s30
          %p848 = scmp.lt.s32.totalorder %s847, 11
          %s849 = scalar_select %p848, %s847, 11
          %s850 = smul.addr %s849, 8
          %s851 = scalar_lea.vmem %s9, %s850
        $region92: #{tpu_custom_call.1} parent=83 // pred_fallthru
          _
      $region84: #{tpu_custom_call.1} parent=5 // pred_fallthru
        _
    $region6: #{tpu_custom_call.1} parent=1 // loop_footer
      %s28 = sadd.s32 1, %s24
    $region7: #{tpu_custom_call.1} parent=1 // loop_footer_branch
      %23 = sbr.rel target = $region3
    $region8: #{tpu_custom_call.1} parent=1 // loop_exit
      _
    %852 = vsyncpa [#allocation3], 1
    %s853 = scalar_lea.sflag [#allocation3], 1
    %854 = vsyncpa %s853, 1
    %855 = vsyncpa [#allocation6], 1
    %s856 = scalar_lea.sflag [#allocation6], 1
    %857 = vsyncpa %s856, 1
    %858 = vsyncpa [#allocation9], 1
    %859 = vsyncpa [#allocation4], 1
    %s860 = scalar_lea.sflag [#allocation4], 1
    %861 = vsyncpa %s860, 1

</llo_original>
